<compile_context>
chip_gen: v5e
topology: v5e:2x2
jax: 0.10.0
libtpu: 0.0.40
codegen_flags: <defaults>
</compile_context>

<pallas_src>
import functools

import jax
import jax.numpy as jnp
from jax.experimental import pallas as pl
from jax.experimental.pallas import tpu as pltpu


def _self_attention_kernel(q_ref, keyp_ref, keysel_ref,
                           wq_ref, bq_ref, wk_ref, bk_ref,
                           out_ref, *, bsz, groups, seq, hid):
    """One invocation: projections -> per-segment scores -> argmax -> gather."""
    BG = bsz * groups            # total number of key segments
    LE = seq * hid               # flattened (seq, hid) segment length

    # ---- projections (1/sqrt(hid) already folded into wq/bq) --------------
    q = jnp.dot(q_ref[...], wq_ref[...],
                preferred_element_type=jnp.float32) + bq_ref[...]      # (B, E)
    k = jnp.dot(keyp_ref[...], wk_ref[...],
                preferred_element_type=jnp.float32) + bk_ref[...]      # (B*G*L, E)

    # ---- per-segment scores -------------------------------------------------
    # attention[b, g] = mean_l <q[b], k[b, g, l]>  ∝  <q[b], sum_l k[b, g, l]>
    # (the positive 1/L factor cannot change the argmax, so it is dropped).
    ksum = jnp.sum(k.reshape(BG, seq, hid), axis=1)                    # (B*G, E)

    # one dot for every (query batch, segment) pair, then mask to segments
    # that belong to the same batch element (no transposes materialized).
    scores = jnp.einsum("be,ge->bg", q, ksum,
                        preferred_element_type=jnp.float32)            # (B, B*G)

    col = jax.lax.broadcasted_iota(jnp.int32, (bsz, BG), 1)
    row = jax.lax.broadcasted_iota(jnp.int32, (bsz, BG), 0)
    own = (col >= row * groups) & (col < (row + 1) * groups)
    masked = jnp.where(own, scores, jnp.float32(-1e30))

    # ---- first-occurrence argmax over segments (torch.max tie-break) -------
    mx = jnp.max(masked, axis=-1, keepdims=True)                       # (B, 1)
    idx = jnp.min(jnp.where(masked == mx, col, BG),
                  axis=-1, keepdims=True)                              # (B, 1)
    onehot = (col == idx).astype(jnp.float32)                          # (B, B*G)

    # ---- gather the winning RAW key segment --------------------------------
    # exact 0/1 weights * raw keys, then a sublane reduction: the selected
    # segment passes through bit-exactly; the store is lane-dense (B, L*E).
    picked = onehot[:, :, None] * keysel_ref[...][None, :, :]          # (B, B*G, L*E)
    out_ref[...] = jnp.sum(picked, axis=1)                             # (B, L*E)


def self_attention_forward(query, key, params):
    """query: (bsz, 1, hid) f32; key: (bsz*G, L, hid) f32  ->  (bsz, L, hid)."""
    bsz = query.shape[0]
    msz, seq, hid = key.shape
    groups = msz // bsz
    assert query.shape == (bsz, 1, hid) and msz == bsz * groups

    # One-time weight transforms (outside the kernel): (out,in)->(in,out)
    # layout and fold the 1/sqrt(hid) scale into the Q projection.
    scale = 1.0 / float(hid) ** 0.5
    wq_t = params["wq"].T * scale              # (E, E)
    bq_s = params["bq"] * scale                # (1, E)
    wk_t = params["wk"].T                      # (E, E)
    bk = params["bk"]                          # (1, E)

    # Layout plumbing only (wrapper-side reshapes, no compute hoisted):
    q2d = query.reshape(bsz, hid)                      # (B, E)
    key_proj = key.reshape(bsz * groups * seq, hid)    # (B*G*L, E)   K matmul slab
    key_sel = key.reshape(bsz * groups, seq * hid)     # (B*G, L*E)   lane-dense segments

    kernel = functools.partial(_self_attention_kernel,
                               bsz=bsz, groups=groups, seq=seq, hid=hid)
    vmem = pl.BlockSpec(memory_space=pltpu.MemorySpace.VMEM)

    out = pl.pallas_call(
        kernel,
        out_shape=jax.ShapeDtypeStruct((bsz, seq * hid), jnp.float32),
        in_specs=[vmem] * 7,
        out_specs=vmem,
    )(q2d, key_proj, key_sel, wq_t, bq_s, wk_t, bk)

    return out.reshape(bsz, seq, hid)


def init_params(rng, hid):
    """Deterministic synthetic parameters (only the layers forward() uses)."""
    k = jax.random.split(rng, 4)
    s = 0.1
    return {
        "wq": s * jax.random.normal(k[0], (hid, hid), jnp.float32),  # nn.Linear (out,in)
        "bq": s * jax.random.normal(k[1], (1, hid), jnp.float32),
        "wk": s * jax.random.normal(k[2], (hid, hid), jnp.float32),
        "bk": s * jax.random.normal(k[3], (1, hid), jnp.float32),
        # TODO(synk): w_v / trans_k_to_v / fc / dropout exist on the torch
        # module but are never used in forward(), so they carry no params here.
    }


def reference(query, key, params):
    """Pure-JAX reference mirroring the torch op order of the returned value."""
    bsz = query.shape[0]
    msz, seq, hid = key.shape
    groups = msz // bsz
    scale = jnp.sqrt(jnp.float32(hid))

    Q = query @ params["wq"].T + params["bq"]           # (B, 1, E)
    K = key @ params["wk"].T + params["bk"]             # (B*G, L, E)
    K = K.reshape(bsz, groups, seq, hid)
    key_v = key.reshape(bsz, groups, seq, hid)

    Qe = Q[:, None, :, :]                               # (B, 1, 1, E)
    energy = jnp.matmul(Qe, jnp.swapaxes(K, -1, -2)) / scale   # (B, G, 1, L)
    total_attention = jnp.sum(energy, axis=-2)          # (B, G, L)
    attention = jnp.mean(total_attention, axis=-1)      # (B, G)
    max_index = jnp.argmax(attention, axis=-1)          # (B,)
    return key_v[jnp.arange(bsz), max_index]            # (B, L, E)


if __name__ == "__main__":
    HID, N_HEADS, DROPOUT = 32, 4, 0.1       # n_heads / dropout unused in forward
    BSZ, GROUPS, SEQ = 2, 3, 8               # msz = BSZ*GROUPS = 6; module `len` == GROUPS

    rng = jax.random.PRNGKey(0)
    r_q, r_k, r_p = jax.random.split(rng, 3)
    query = jax.random.normal(r_q, (BSZ, 1, HID), jnp.float32)
    key = jax.random.normal(r_k, (BSZ * GROUPS, SEQ, HID), jnp.float32)
    params = init_params(r_p, HID)

    out = self_attention_forward(query, key, params)
    out = jax.block_until_ready(out)

    ref = reference(query, key, params)
    assert out.shape == (BSZ, SEQ, HID)
    err = float(jnp.max(jnp.abs(out - ref)))
    assert jnp.allclose(out, ref, atol=1e-4, rtol=1e-4), f"max abs err {err}"
    print("KERNEL_OK")
</pallas_src>

<mosaic_0001>
module attributes {stable_mosaic.version = 11 : i64} {
  func.func @_self_attention_kernel(%arg0: memref<2x32xf32, #tpu.memory_space<vmem>>, %arg1: memref<48x32xf32, #tpu.memory_space<vmem>>, %arg2: memref<6x256xf32, #tpu.memory_space<vmem>>, %arg3: memref<32x32xf32, #tpu.memory_space<vmem>>, %arg4: memref<1x32xf32, #tpu.memory_space<vmem>>, %arg5: memref<32x32xf32, #tpu.memory_space<vmem>>, %arg6: memref<1x32xf32, #tpu.memory_space<vmem>>, %arg7: memref<2x256xf32, #tpu.memory_space<vmem>>) attributes {dimension_semantics = [], scalar_prefetch = 0 : i64, scratch_operands = 0 : i64, tpu.core_type = #tpu.core_type<tc>} {
    %c0 = arith.constant 0 : index
    %c0_0 = arith.constant 0 : index
    %0 = vector.load %arg0[%c0, %c0_0] : memref<2x32xf32, #tpu.memory_space<vmem>>, vector<2x32xf32>
    %c0_1 = arith.constant 0 : index
    %c0_2 = arith.constant 0 : index
    %1 = vector.load %arg3[%c0_1, %c0_2] : memref<32x32xf32, #tpu.memory_space<vmem>>, vector<32x32xf32>
    %cst = arith.constant dense<0.000000e+00> : vector<2x32xf32>
    %2 = tpu.matmul %0, %1, %cst {dimension_numbers = #tpu.dot_dimension_numbers<[1], [0], [0], [1], [0, 0, 1, 1], [], []>} : vector<2x32xf32>, vector<32x32xf32>, vector<2x32xf32> -> vector<2x32xf32>
    %c0_3 = arith.constant 0 : index
    %c0_4 = arith.constant 0 : index
    %3 = vector.load %arg4[%c0_3, %c0_4] : memref<1x32xf32, #tpu.memory_space<vmem>>, vector<1x32xf32>
    %4 = vector.broadcast %3 : vector<1x32xf32> to vector<2x32xf32>
    %5 = arith.addf %2, %4 : vector<2x32xf32>
    %c0_5 = arith.constant 0 : index
    %c0_6 = arith.constant 0 : index
    %6 = vector.load %arg1[%c0_5, %c0_6] : memref<48x32xf32, #tpu.memory_space<vmem>>, vector<48x32xf32>
    %c0_7 = arith.constant 0 : index
    %c0_8 = arith.constant 0 : index
    %7 = vector.load %arg5[%c0_7, %c0_8] : memref<32x32xf32, #tpu.memory_space<vmem>>, vector<32x32xf32>
    %cst_9 = arith.constant dense<0.000000e+00> : vector<48x32xf32>
    %8 = tpu.matmul %6, %7, %cst_9 {dimension_numbers = #tpu.dot_dimension_numbers<[1], [0], [0], [1], [0, 0, 1, 1], [], []>} : vector<48x32xf32>, vector<32x32xf32>, vector<48x32xf32> -> vector<48x32xf32>
    %c0_10 = arith.constant 0 : index
    %c0_11 = arith.constant 0 : index
    %9 = vector.load %arg6[%c0_10, %c0_11] : memref<1x32xf32, #tpu.memory_space<vmem>>, vector<1x32xf32>
    %10 = vector.broadcast %9 : vector<1x32xf32> to vector<48x32xf32>
    %11 = arith.addf %8, %10 : vector<48x32xf32>
    %12 = vector.shape_cast %11 : vector<48x32xf32> to vector<6x8x32xf32>
    %cst_12 = arith.constant dense<0.000000e+00> : vector<6x32xf32>
    %13 = vector.multi_reduction <add>, %12, %cst_12 [1] : vector<6x8x32xf32> to vector<6x32xf32>
    "tpu.trace_start"() <{level = 10 : i32, message = "be,ge->bg"}> : () -> ()
    %cst_13 = arith.constant dense<0.000000e+00> : vector<2x6xf32>
    %14 = tpu.matmul %5, %13, %cst_13 {dimension_numbers = #tpu.dot_dimension_numbers<[1], [1], [0], [0], [0, 0, 1, 0], [], []>} : vector<2x32xf32>, vector<6x32xf32>, vector<2x6xf32> -> vector<2x6xf32>
    "tpu.trace_stop"() : () -> ()
    %15 = tpu.iota {dimensions = array<i32: 1>} : vector<2x6xi32>
    %16 = tpu.iota {dimensions = array<i32: 0>} : vector<2x6xi32>
    %c3_i32 = arith.constant 3 : i32
    %17 = vector.broadcast %c3_i32 : i32 to vector<2x6xi32>
    %18 = arith.muli %16, %17 : vector<2x6xi32>
    %19 = arith.cmpi sge, %15, %18 : vector<2x6xi32>
    %c1_i32 = arith.constant 1 : i32
    %20 = vector.broadcast %c1_i32 : i32 to vector<2x6xi32>
    %21 = arith.addi %16, %20 : vector<2x6xi32>
    %c3_i32_14 = arith.constant 3 : i32
    %22 = vector.broadcast %c3_i32_14 : i32 to vector<2x6xi32>
    %23 = arith.muli %21, %22 : vector<2x6xi32>
    %24 = arith.cmpi slt, %15, %23 : vector<2x6xi32>
    %25 = arith.andi %19, %24 : vector<2x6xi1>
    %cst_15 = arith.constant -1.000000e+30 : f32
    %26 = vector.broadcast %cst_15 : f32 to vector<2x6xf32>
    %27 = arith.select %25, %14, %26 : vector<2x6xi1>, vector<2x6xf32>
    %cst_16 = arith.constant dense<0xFF800000> : vector<2xf32>
    %28 = vector.multi_reduction <maximumf>, %27, %cst_16 [1] : vector<2x6xf32> to vector<2xf32>
    %29 = vector.shape_cast %28 : vector<2xf32> to vector<2x1xf32>
    %30 = vector.broadcast %29 : vector<2x1xf32> to vector<2x6xf32>
    %31 = arith.cmpf oeq, %27, %30 : vector<2x6xf32>
    %c6_i32 = arith.constant 6 : i32
    %32 = vector.broadcast %c6_i32 : i32 to vector<2x6xi32>
    %33 = arith.select %31, %15, %32 : vector<2x6xi1>, vector<2x6xi32>
    %cst_17 = arith.constant dense<2147483647> : vector<2xi32>
    %34 = vector.multi_reduction <minsi>, %33, %cst_17 [1] : vector<2x6xi32> to vector<2xi32>
    %35 = vector.shape_cast %34 : vector<2xi32> to vector<2x1xi32>
    %36 = vector.broadcast %35 : vector<2x1xi32> to vector<2x6xi32>
    %37 = arith.cmpi eq, %15, %36 : vector<2x6xi32>
    %38 = arith.extui %37 : vector<2x6xi1> to vector<2x6xi32>
    %39 = arith.sitofp %38 : vector<2x6xi32> to vector<2x6xf32>
    %40 = vector.shape_cast %39 : vector<2x6xf32> to vector<2x6x1xf32>
    %c0_18 = arith.constant 0 : index
    %c0_19 = arith.constant 0 : index
    %41 = vector.load %arg2[%c0_18, %c0_19] : memref<6x256xf32, #tpu.memory_space<vmem>>, vector<6x256xf32>
    %42 = vector.shape_cast %41 : vector<6x256xf32> to vector<1x6x256xf32>
    %43 = vector.broadcast %40 : vector<2x6x1xf32> to vector<2x6x256xf32>
    %44 = vector.broadcast %42 : vector<1x6x256xf32> to vector<2x6x256xf32>
    %45 = arith.mulf %43, %44 : vector<2x6x256xf32>
    %cst_20 = arith.constant dense<0.000000e+00> : vector<2x256xf32>
    %46 = vector.multi_reduction <add>, %45, %cst_20 [1] : vector<2x6x256xf32> to vector<2x256xf32>
    %c0_21 = arith.constant 0 : index
    %c0_22 = arith.constant 0 : index
    %47 = vector.load %arg7[%c0_21, %c0_22] : memref<2x256xf32, #tpu.memory_space<vmem>>, vector<2x256xf32>
    tpu.vector_store %arg7[%c0_21, %c0_22], %46 {strides = array<i32>} : memref<2x256xf32, #tpu.memory_space<vmem>>, vector<2x256xf32>,
    return
  }
}

</mosaic_0001>

<llo_original>
// kernel: tpu_custom_call.1
$region0: #{tpu_custom_call.1}
  #allocation0 [shape = 'u32[]', space=smem, size = 0x4, offset = 0x4, fixed_abs, tag = 'smem constant byte address 0x4 - core index']
  #allocation1 [shape = 'u32[72,128]{1,0:T(1,128)}', space=vmem, size = 0x9000, scoped, tag = 'internal scratch']
  %s0 = inlined_call_operand.hbm [shape: f32[2,32], index: 0, kind: input, shape index: {}]
  %s1 = inlined_call_operand.vmem [shape: f32[48,32], index: 1, kind: input, shape index: {}]
  %s2 = inlined_call_operand.vmem [shape: f32[6,256], index: 2, kind: input, shape index: {}]
  %s3 = inlined_call_operand.vmem [shape: f32[32,32], index: 3, kind: input, shape index: {}]
  %s4 = inlined_call_operand.vmem [shape: f32[1,32], index: 4, kind: input, shape index: {}]
  %s5 = inlined_call_operand.vmem [shape: f32[32,32], index: 5, kind: input, shape index: {}]
  %s6 = inlined_call_operand.vmem [shape: f32[1,32], index: 6, kind: input, shape index: {}]
  %s7 = inlined_call_operand.hbm [shape: f32[2,256], index: 7, kind: output, shape index: {}]
  %s8 = sld [smem:[#allocation0]]
  $region42: #{tpu_custom_call.1} parent=0
    _
  %s10 = ssub.s32 1, %s8
  %s11 = scalar_select 0, %s10, %s8
  $region1: #{tpu_custom_call.1} parent=0
    #allocation2 [shape = 'u8[1024]{0}', space=vmem, size = 0x400, scoped, tag = 'input window, operand 0, single buffered']
    #allocation3 [shape = 's32[1]{0}', space=sflag, size = 0x4, scoped, tag = 'scoped memory for tpu_custom_call.1']
    #allocation4 [shape = 's32[1]{0}', space=sflag, size = 0x4, scoped, tag = 'scoped memory for tpu_custom_call.1']
    #allocation5 [shape = 'u8[2048]{0}', space=vmem, size = 0x800, scoped, tag = 'output window, operand 0, single buffered']
    %12 = vsyncpa [#allocation3], 0
    %13 = vsyncpa [#allocation4], 0
    // Predicated region
    $region2: #{tpu_custom_call.1} parent=1 // pred_check
      _
    $region3: #{tpu_custom_call.1} parent=1 // pred_check_branch
      %15 = sbr.rel (0) target = $region5
    $region4: #{tpu_custom_call.1} parent=1 // pred_region
      %17 = vsyncadd [#allocation3], 0
      %s19 = sshll.u32 %s0, 4
      %s20 = int_to_ptr.hbm [resolvable:$true] %s19
      %s21 = sshll.u32 [#allocation2], 4
      %s22 = int_to_ptr.vmem [resolvable:$true] %s21
      %24 = dma.hbm_to_vmem [thread:$0]  %s20, 32, %s22, [#allocation3]
    $region5: #{tpu_custom_call.1} parent=1 // pred_fallthru
      _
    // Predicated region
    $region6: #{tpu_custom_call.1} parent=1 // pred_check
      _
    $region7: #{tpu_custom_call.1} parent=1 // pred_check_branch
      %26 = sbr.rel (0) target = $region9
    $region8: #{tpu_custom_call.1} parent=1 // pred_region
      _
    $region9: #{tpu_custom_call.1} parent=1 // pred_fallthru
      _
    // Predicated region
    $region10: #{tpu_custom_call.1} parent=1 // pred_check
      _
    $region11: #{tpu_custom_call.1} parent=1 // pred_check_branch
      %28 = sbr.rel (0) target = $region13
    $region12: #{tpu_custom_call.1} parent=1 // pred_region
      _
    $region13: #{tpu_custom_call.1} parent=1 // pred_fallthru
      _
    // Predicated region
    $region14: #{tpu_custom_call.1} parent=1 // pred_check
      _
    $region15: #{tpu_custom_call.1} parent=1 // pred_check_branch
      %30 = sbr.rel (0) target = $region17
    $region16: #{tpu_custom_call.1} parent=1 // pred_region
      _
    $region17: #{tpu_custom_call.1} parent=1 // pred_fallthru
      _
    // Predicated region
    $region18: #{tpu_custom_call.1} parent=1 // pred_check
      _
    $region19: #{tpu_custom_call.1} parent=1 // pred_check_branch
      %32 = sbr.rel (0) target = $region21
    $region20: #{tpu_custom_call.1} parent=1 // pred_region
      _
    $region21: #{tpu_custom_call.1} parent=1 // pred_fallthru
      _
    // Predicated region
    $region22: #{tpu_custom_call.1} parent=1 // pred_check
      _
    $region23: #{tpu_custom_call.1} parent=1 // pred_check_branch
      %34 = sbr.rel (0) target = $region25
    $region24: #{tpu_custom_call.1} parent=1 // pred_region
      _
    $region25: #{tpu_custom_call.1} parent=1 // pred_fallthru
      _
    // Predicated region
    $region26: #{tpu_custom_call.1} parent=1 // pred_check
      _
    $region27: #{tpu_custom_call.1} parent=1 // pred_check_branch
      %36 = sbr.rel (0) target = $region29
    $region28: #{tpu_custom_call.1} parent=1 // pred_region
      _
    $region29: #{tpu_custom_call.1} parent=1 // pred_fallthru
      _
    // Predicated region
    $region30: #{tpu_custom_call.1} parent=1 // pred_check
      _
    $region31: #{tpu_custom_call.1} parent=1 // pred_check_branch
      %38 = sbr.rel (0) target = $region33
    $region32: #{tpu_custom_call.1} parent=1 // pred_region
      %40 = dma.done [#allocation3], 32
    $region33: #{tpu_custom_call.1} parent=1 // pred_fallthru
      _
    %v41 = vld [vmem:[#allocation2] sm:$0x3]
    %v42 = vld [vmem:[%s3] sm:$0xff]
    %v43 = vld [vmem:[%s3 + $0x8] sm:$0xff]
    %v44 = vld [vmem:[%s3 + $0x10] sm:$0xff]
    %v45 = vld [vmem:[%s3 + $0x18] sm:$0xff]
    %v46 = vld [vmem:[%s4] sm:$0x1]
    %v48 = vperm.slane %v46, 0
    %vm50 = vcmask 261120
    %v52 = vsel %vm50, %v41, 0
    %54 = vmatpush.msra.mxu0 0.0
    %55 = vmatpush.msra.mxu0 0.0
    %56 = vmatpush.msra.mxu0 0.0
    %57 = vmatpush.msra.mxu0 0.0
    %58 = vmatpush.msra.mxu0 0.0
    %59 = vmatpush.msra.mxu0 0.0
    %60 = vmatpush.msra.mxu0 0.0
    %61 = vmatpush.msra.mxu0 0.0
    %62 = vmatpush.msra.mxu0 0.0
    %63 = vmatpush.msra.mxu0 0.0
    %64 = vmatpush.msra.mxu0 0.0
    %65 = vmatpush.msra.mxu0 0.0
    %66 = vmatpush.msra.mxu0 %v45
    %67 = vmatpush.msra.mxu0 %v44
    %68 = vmatpush.msra.mxu0 %v43
    %69 = vmatpush.msra.mxu0 %v42
    %70 = vmatmul.f32.gmra.mxu0 %v52
    %v71 = vpop.f32.mrf.mxu0
    %v72 = vadd.f32 %v48, %v71
    %73 = vdwg.mxu0
    %v74 = vld [vmem:[%s1] sm:$0xff]
    %v75 = vld [vmem:[%s1 + $0x8] sm:$0xff]
    %v76 = vld [vmem:[%s1 + $0x10] sm:$0xff]
    %v77 = vld [vmem:[%s1 + $0x18] sm:$0xff]
    %v78 = vld [vmem:[%s1 + $0x20] sm:$0xff]
    %v79 = vld [vmem:[%s1 + $0x28] sm:$0xff]
    %v80 = vld [vmem:[%s5] sm:$0xff]
    %v81 = vld [vmem:[%s5 + $0x8] sm:$0xff]
    %v82 = vld [vmem:[%s5 + $0x10] sm:$0xff]
    %v83 = vld [vmem:[%s5 + $0x18] sm:$0xff]
    %v84 = vld [vmem:[%s6] sm:$0x1]
    %v86 = vperm.slane %v84, 0
    %v89 = vsel %vm50, %v74, 0
    %v92 = vsel %vm50, %v75, 0
    %v95 = vsel %vm50, %v76, 0
    %v98 = vsel %vm50, %v77, 0
    %v101 = vsel %vm50, %v78, 0
    %v104 = vsel %vm50, %v79, 0
    %106 = vmatpush.msra.mxu0 0.0
    %107 = vmatpush.msra.mxu0 0.0
    %108 = vmatpush.msra.mxu0 0.0
    %109 = vmatpush.msra.mxu0 0.0
    %110 = vmatpush.msra.mxu0 0.0
    %111 = vmatpush.msra.mxu0 0.0
    %112 = vmatpush.msra.mxu0 0.0
    %113 = vmatpush.msra.mxu0 0.0
    %114 = vmatpush.msra.mxu0 0.0
    %115 = vmatpush.msra.mxu0 0.0
    %116 = vmatpush.msra.mxu0 0.0
    %117 = vmatpush.msra.mxu0 0.0
    %118 = vmatpush.msra.mxu0 %v83
    %119 = vmatpush.msra.mxu0 %v82
    %120 = vmatpush.msra.mxu0 %v81
    %121 = vmatpush.msra.mxu0 %v80
    %122 = vmatmul.f32.gmra.mxu0 %v89
    %v123 = vpop.f32.mrf.mxu0
    %v124 = vadd.f32 %v86, %v123
    %125 = vmatmul.f32.gmra.mxu0 %v92
    %v126 = vpop.f32.mrf.mxu0
    %v127 = vadd.f32 %v86, %v126
    %128 = vmatmul.f32.gmra.mxu0 %v95
    %v129 = vpop.f32.mrf.mxu0
    %v130 = vadd.f32 %v86, %v129
    %131 = vmatmul.f32.gmra.mxu0 %v98
    %v132 = vpop.f32.mrf.mxu0
    %v133 = vadd.f32 %v86, %v132
    %134 = vmatmul.f32.gmra.mxu0 %v101
    %v135 = vpop.f32.mrf.mxu0
    %v136 = vadd.f32 %v86, %v135
    %137 = vmatmul.f32.gmra.mxu0 %v104
    %v138 = vpop.f32.mrf.mxu0
    %v139 = vadd.f32 %v86, %v138
    %140 = vdwg.mxu0
    %v141 = vsel %vm50, %v124, 0.0
    %v142 = vrot.slane %v141, 4
    %v143 = vadd.f32 %v141, %v142
    %v144 = vrot.slane %v143, 2
    %v145 = vadd.f32 %v143, %v144
    %v146 = vrot.slane %v145, 1
    %v147 = vadd.f32 %v145, %v146
    %v148 = vsel %vm50, %v127, 0.0
    %v149 = vrot.slane %v148, 4
    %v150 = vadd.f32 %v148, %v149
    %v151 = vrot.slane %v150, 2
    %v152 = vadd.f32 %v150, %v151
    %v153 = vrot.slane %v152, 1
    %v154 = vadd.f32 %v152, %v153
    %v155 = vsel %vm50, %v130, 0.0
    %v156 = vrot.slane %v155, 4
    %v157 = vadd.f32 %v155, %v156
    %v158 = vrot.slane %v157, 2
    %v159 = vadd.f32 %v157, %v158
    %v160 = vrot.slane %v159, 1
    %v161 = vadd.f32 %v159, %v160
    %v162 = vsel %vm50, %v133, 0.0
    %v163 = vrot.slane %v162, 4
    %v164 = vadd.f32 %v162, %v163
    %v165 = vrot.slane %v164, 2
    %v166 = vadd.f32 %v164, %v165
    %v167 = vrot.slane %v166, 1
    %v168 = vadd.f32 %v166, %v167
    %v169 = vsel %vm50, %v136, 0.0
    %v170 = vrot.slane %v169, 4
    %v171 = vadd.f32 %v169, %v170
    %v172 = vrot.slane %v171, 2
    %v173 = vadd.f32 %v171, %v172
    %v174 = vrot.slane %v173, 1
    %v175 = vadd.f32 %v173, %v174
    %v176 = vsel %vm50, %v139, 0.0
    %v177 = vrot.slane %v176, 4
    %v178 = vadd.f32 %v176, %v177
    %v179 = vrot.slane %v178, 2
    %v180 = vadd.f32 %v178, %v179
    %v181 = vrot.slane %v180, 1
    %v182 = vadd.f32 %v180, %v181
    %vm189 = vcmask 1041409
    %v190 = vsel %vm189, %v154, %v147
    %vm191 = vcmask 1042434
    %v192 = vsel %vm191, %v161, %v190
    %vm193 = vcmask 1043459
    %v194 = vsel %vm193, %v168, %v192
    %vm195 = vcmask 1044484
    %v196 = vsel %vm195, %v175, %v194
    %vm197 = vcmask 1045509
    %v198 = vsel %vm197, %v182, %v196
    %v200 = vsel %vm50, %v72, 0
    %v202 = vsel %vm50, %v198, 0
    %204 = vmatpush.xpose.msra.mxu0 0.0
    %205 = vmatpush.xpose.msra.mxu0 0.0
    %206 = vmatpush.xpose.msra.mxu0 0.0
    %207 = vmatpush.xpose.msra.mxu0 0.0
    %208 = vmatpush.xpose.msra.mxu0 0.0
    %209 = vmatpush.xpose.msra.mxu0 0.0
    %210 = vmatpush.xpose.msra.mxu0 0.0
    %211 = vmatpush.xpose.msra.mxu0 0.0
    %212 = vmatpush.xpose.msra.mxu0 0.0
    %213 = vmatpush.xpose.msra.mxu0 0.0
    %214 = vmatpush.xpose.msra.mxu0 0.0
    %215 = vmatpush.xpose.msra.mxu0 0.0
    %216 = vmatpush.xpose.msra.mxu0 0.0
    %217 = vmatpush.xpose.msra.mxu0 0.0
    %218 = vmatpush.xpose.msra.mxu0 0.0
    %219 = vmatpush.xpose.msra.mxu0 %v202
    %220 = vmatmul.f32.gmra.mxu0 %v200
    %v221 = vpop.f32.mrf.mxu0
    %v222 = vadd.f32 0.0, %v221
    %223 = vdwg.mxu0
    %v224 = vlaneseq
    %v225 = vand.u32 %v224, 127
    %v226 = vlaneseq
    %v227 = vshrl.u32 %v226, 7
    %v228 = vmul.u32 %v227, 3
    %vm229 = vcmp.ge.s32.totalorder %v225, %v228
    %v230 = vadd.s32 %v227, 1
    %v231 = vmul.u32 %v230, 3
    %vm232 = vcmp.lt.s32.totalorder %v225, %v231
    %vm233 = vmand %vm229, %vm232
    %v234 = vsel %vm233, %v222, -1e+30
    %vm235 = vcmask 41984
    %v236 = vsel %vm235, %v234, -inf
    %237 = vmax.xlane.f32.xlu0 %v236
    %v238 = vpop.xlane.xlu0 %237
    %vm239 = vcmp.eq.f32.partialorder %v234, %v238
    %v240 = vsel %vm239, %v225, 6
    %v241 = vsel %vm235, %v240, 2147483647
    %v242 = vand.u32 %v241, 65535
    %v243 = vshra.s32 %v241, 16
    %v244 = vcvt.s32.f32 %v242
    %v245 = vcvt.s32.f32 %v243
    %246 = vmin.xlane.f32.xlu0 %v245
    %v247 = vpop.xlane.xlu0 %246
    %vm248 = vcmp.eq.f32.partialorder %v245, %v247
    %v249 = vsel %vm248, %v244, inf
    %250 = vmin.xlane.f32.xlu0 %v249
    %v251 = vpop.xlane.xlu0 %250
    %v252 = vcvt.f32.s32 %v251
    %v253 = vcvt.f32.s32 %v247
    %v254 = vshll.u32 %v253, 16
    %v255 = vadd.s32 %v254, %v252
    %vm256 = vcmp.eq.s32.totalorder %v225, %v255
    %v257 = vsel %vm256, 1, 0
    %v258 = vcvt.s32.f32 %v257
    %v259 = vperm.slane %v258, 0
    %v260 = vlaneseq
    %v261 = vshrl.u32 %v260, 7
    %263 = vset.pattern.permute.xlu0 %v261
    %264 = vperm.xlu0 %263, %v259
    %v265 = vpop.permute.xlu0 %264
    %v266 = vperm.slane %v258, 1
    %v267 = vlaneseq
    %v268 = vshrl.u32 %v267, 7
    %270 = vset.pattern.permute.xlu0 %v268
    %271 = vperm.xlu0 %270, %v266
    %v272 = vpop.permute.xlu0 %271
    %v273 = vld [vmem:[%s2] sm:$0x3f]
    %v274 = vld [vmem:[%s2 + $0x8] sm:$0x3f]
    %v275 = vmul.f32 %v265, %v273
    %v276 = vmul.f32 %v265, %v274
    %v277 = vmul.f32 %v272, %v273
    %v278 = vmul.f32 %v272, %v274
    %vm279 = vcmask 1045504
    %v280 = vsel %vm279, %v275, 0.0
    %v281 = vrot.slane %v280, 4
    %v282 = vadd.f32 %v280, %v281
    %v283 = vrot.slane %v282, 2
    %v284 = vadd.f32 %v282, %v283
    %v285 = vrot.slane %v284, 1
    %v286 = vadd.f32 %v284, %v285
    %v287 = vsel %vm279, %v276, 0.0
    %v288 = vrot.slane %v287, 4
    %v289 = vadd.f32 %v287, %v288
    %v290 = vrot.slane %v289, 2
    %v291 = vadd.f32 %v289, %v290
    %v292 = vrot.slane %v291, 1
    %v293 = vadd.f32 %v291, %v292
    %v294 = vsel %vm279, %v277, 0.0
    %v295 = vrot.slane %v294, 4
    %v296 = vadd.f32 %v294, %v295
    %v297 = vrot.slane %v296, 2
    %v298 = vadd.f32 %v296, %v297
    %v299 = vrot.slane %v298, 1
    %v300 = vadd.f32 %v298, %v299
    %v301 = vsel %vm279, %v278, 0.0
    %v302 = vrot.slane %v301, 4
    %v303 = vadd.f32 %v301, %v302
    %v304 = vrot.slane %v303, 2
    %v305 = vadd.f32 %v303, %v304
    %v306 = vrot.slane %v305, 1
    %v307 = vadd.f32 %v305, %v306
    %v312 = vrot.slane %v293, 6
    %v313 = vrot.slane %v307, 6
    %vm314 = vcmask 1041408
    %v315 = vsel %vm314, %v286, %v312
    %v316 = vsel %vm314, %v300, %v313
    %v317 = vsel %vm195, %v315, %v315
    %vm318 = vcmask 1046534
    %v319 = vsel %vm318, %v315, %v317
    %v320 = vrot.slane %v316, 7
    %v321 = vsel %vm189, %v320, %v319
    %v322 = vsel %vm193, %v320, %v321
    %v323 = vsel %vm197, %v320, %v322
    %vm324 = vcmask 1047559
    %v325 = vsel %vm324, %v320, %v323
    %327 = vst [vmem:[#allocation5] sm:$0xf] %v325
    // Predicated region
    $region34: #{tpu_custom_call.1} parent=1 // pred_check
      _
    $region35: #{tpu_custom_call.1} parent=1 // pred_check_branch
      %329 = sbr.rel (0) target = $region37
    $region36: #{tpu_custom_call.1} parent=1 // pred_region
      %331 = vsyncadd [#allocation4], 0
      %s333 = sshll.u32 [#allocation5], 4
      %s334 = int_to_ptr.vmem [resolvable:$true] %s333
      %s335 = sshll.u32 %s7, 4
      %s336 = int_to_ptr.hbm [resolvable:$true] %s335
      %338 = dma.vmem_to_hbm [thread:$0]  %s334, 64, %s336, [#allocation4]
    $region37: #{tpu_custom_call.1} parent=1 // pred_fallthru
      _
    // Predicated region
    $region38: #{tpu_custom_call.1} parent=1 // pred_check
      _
    $region39: #{tpu_custom_call.1} parent=1 // pred_check_branch
      %340 = sbr.rel (0) target = $region41
    $region40: #{tpu_custom_call.1} parent=1 // pred_region
      %342 = dma.done [#allocation4], 64
    $region41: #{tpu_custom_call.1} parent=1 // pred_fallthru
      _
    %343 = vsyncpa [#allocation3], 1
    %344 = vsyncpa [#allocation4], 1

</llo_original>
